<compile_context>
chip_gen: v5e
topology: v5e:2x2
jax: 0.10.0
libtpu: 0.0.40
codegen_flags: <defaults>
</compile_context>

<pallas_src>
import jax
import jax.numpy as jnp
import numpy as np
from jax.experimental import pallas as pl
from jax.experimental.pallas import tpu as pltpu

_LANES = 128

# Row offsets of each constant inside the packed slab (all multiples of 8).
_A1, _M1, _A2, _A3, _M3, _A4, _B = 0, 128, 256, 384, 512, 640, 768
_SLAB_ROWS = 776


# ----------------------------------------------------------------------------
# Host-side operator fusion.
# ----------------------------------------------------------------------------
def _fused_conv_matrix(weight, c, h, w, reflect):
    """(c*h*w, c*ho*wo) matrix A with flat(conv_layer(img)) == flat(img) @ A.

    Built by pushing the c*h*w basis images through the (ReflectionPad2d(1) +)
    3x3 VALID conv; both the pad and the conv are linear, so this captures the
    whole layer (minus its bias) exactly."""
    p = c * h * w
    basis = jnp.eye(p, dtype=jnp.float32).reshape(p, c, h, w)
    if reflect:
        basis = jnp.pad(basis, ((0, 0), (0, 0), (1, 1), (1, 1)), mode="reflect")
    out = jax.lax.conv_general_dilated(
        basis, weight.astype(jnp.float32), window_strides=(1, 1),
        padding="VALID", dimension_numbers=("NCHW", "OIHW", "NCHW"),
        precision=jax.lax.Precision.HIGHEST)
    return out.reshape(p, -1)


def _block_mean_matrix(c, p):
    """(c*p, c*p) block-diagonal 1/p matrix: right-multiplying a (N, c*p) row by
    it yields the per-channel spatial mean, already broadcast back to every lane."""
    m = np.zeros((c * p, c * p), np.float32)
    for ch in range(c):
        m[ch * p:(ch + 1) * p, ch * p:(ch + 1) * p] = 1.0 / p
    return jnp.asarray(m)


def _channel_repeat_matrix(c, p):
    """(c, c*p) 0/1 matrix repeating each channel value across its h*w block —
    the (N,C,1,1) + (N,C,H,W) broadcast of the residual add."""
    r = np.zeros((c, c * p), np.float32)
    for ch in range(c):
        r[ch, ch * p:(ch + 1) * p] = 1.0
    return jnp.asarray(r)


def _pad_rows(a, rows):
    out = jnp.zeros((rows, _LANES), jnp.float32)
    return out.at[:a.shape[0], :a.shape[1]].set(a.astype(jnp.float32))


# ----------------------------------------------------------------------------
# Kernel
# ----------------------------------------------------------------------------
def _residual_block_kernel(x_ref, c_ref, o_ref):
    f32 = jnp.float32

    def dot(a, b):
        return jnp.dot(a, b, preferred_element_type=f32)

    def inorm(y, m, eps=1e-5):
        # `m` is a block-diagonal mean matrix: one tiny matmul produces the
        # per-(n, c) spatial mean already broadcast to every lane; the same
        # matrix applied to d*d gives the biased variance.  rsqrt runs on EUP.
        mean = dot(y, m)
        d = y - mean
        var = dot(d * d, m)
        return d * jax.lax.rsqrt(var + eps)

    x = x_ref[...].astype(f32)                               # (N, 128) lane-dense

    a1 = c_ref[_A1:_A1 + _LANES, :]
    m1 = c_ref[_M1:_M1 + _LANES, :]
    a2 = c_ref[_A2:_A2 + _LANES, :]
    a3 = c_ref[_A3:_A3 + _LANES, :]
    m3 = c_ref[_M3:_M3 + _LANES, :]
    a4 = c_ref[_A4:_A4 + _LANES, :]
    b1 = c_ref[_B + 0:_B + 1, :]
    b2 = c_ref[_B + 1:_B + 2, :]
    b3 = c_ref[_B + 2:_B + 3, :]
    b4 = c_ref[_B + 3:_B + 4, :]

    # ConvLayer #1: reflect-pad Conv2d -> InstanceNorm -> ReLU -> MyConv2D (valid)
    h = dot(x, a1) + b1                                      # (N, 128), lanes 0..99 live
    h = inorm(h, m1)
    h = jnp.maximum(h, 0.0)
    h = dot(h, a2) + b2                                      # lanes 0..35 live

    # ConvLayer #2 (relu=False): reflect-pad Conv2d -> InstanceNorm -> MyConv2D (valid)
    h = dot(h, a3) + b3
    h = inorm(h, m3)
    h = dot(h, a4) + b4                                      # already channel-repeated (100 lanes)

    # Residual add + single unmasked 128-lane store.
    o_ref[...] = (x + h).astype(o_ref.dtype)


# ----------------------------------------------------------------------------
# Wrapper
# ----------------------------------------------------------------------------
def residual_block(x, params):
    """x: (N, C, H, W) float32.  params hold PyTorch-layout (O, I, 3, 3) weights and
    (O,) biases for Conv2d (w1/b1, w2/b2) and MyConv2D (mw1/mb1, mw2/mb2)."""
    n, c, h, w = x.shape
    if h - 4 != 1 or w - 4 != 1:
        raise ValueError(
            "ResidualBlock's `conv(x) + x` only broadcasts for H == W == 5 "
            f"(got H={h}, W={w}); same restriction as the PyTorch module.")
    p1, p2 = h * w, (h - 2) * (w - 2)                        # 25, 9
    cp1, cp2 = c * p1, c * p2                                # 100, 36
    if cp1 > _LANES or cp2 > _LANES:
        raise ValueError("C*H*W must fit in 128 lanes for this fused kernel.")

    # --- fused conv operators (reflection padding baked in where applicable) ---
    a1 = _fused_conv_matrix(params["w1"], c, h, w, reflect=True)             # (100, 100)
    a2 = _fused_conv_matrix(params["mw1"], c, h, w, reflect=False)           # (100, 36)
    a3 = _fused_conv_matrix(params["w2"], c, h - 2, w - 2, reflect=True)     # (36, 36)
    a4 = jnp.dot(
        _fused_conv_matrix(params["mw2"], c, h - 2, w - 2, reflect=False),   # (36, 4)
        _channel_repeat_matrix(c, p1),                                       # (4, 100)
        precision=jax.lax.Precision.HIGHEST)                                 # (36, 100)

    # --- bias rows in the flattened (C*P) layout ---
    def brow(b, p):
        return jnp.repeat(b.astype(jnp.float32), p)          # (C*P,)

    brows = jnp.zeros((8, _LANES), jnp.float32)
    brows = brows.at[0, :cp1].set(brow(params["b1"], p1))
    brows = brows.at[1, :cp2].set(brow(params["mb1"], p2))
    brows = brows.at[2, :cp2].set(brow(params["b2"], p2))
    brows = brows.at[3, :cp1].set(brow(params["mb2"], p1))   # residual-broadcast bias

    m1 = _block_mean_matrix(c, p1)                           # (100, 100)
    m3 = _block_mean_matrix(c, p2)                           # (36, 36)

    # --- ONE packed constant slab (single DMA; 8-row-aligned sections) ---
    slab = jnp.concatenate(
        [_pad_rows(a1, _LANES), _pad_rows(m1, _LANES), _pad_rows(a2, _LANES),
         _pad_rows(a3, _LANES), _pad_rows(m3, _LANES), _pad_rows(a4, _LANES),
         brows], axis=0)
    assert slab.shape == (_SLAB_ROWS, _LANES)

    # --- lane-dense, 128-padded activation / residual input ---
    x128 = jnp.zeros((n, _LANES), x.dtype).at[:, :cp1].set(x.reshape(n, cp1))

    vmem = pl.BlockSpec(memory_space=pltpu.MemorySpace.VMEM)
    cost = pl.CostEstimate(
        flops=int(8 * 2 * n * _LANES * _LANES),
        transcendentals=int(2 * n * _LANES),
        bytes_accessed=int(slab.size * 4 + 2 * n * _LANES * 4),
    )
    out128 = pl.pallas_call(
        _residual_block_kernel,
        out_shape=jax.ShapeDtypeStruct((n, _LANES), x.dtype),
        in_specs=[vmem, vmem],
        out_specs=vmem,
        cost_estimate=cost,
    )(x128, slab)
    return out128[:, :cp1].reshape(n, c, h, w)


# ----------------------------------------------------------------------------
# Pure-JAX reference (non-Pallas) for numerics checking.
# ----------------------------------------------------------------------------
def _reference_forward(x, params):
    def conv3x3(a, wt, bb, reflect):
        if reflect:
            a = jnp.pad(a, ((0, 0), (0, 0), (1, 1), (1, 1)), mode="reflect")
        y = jax.lax.conv_general_dilated(
            a, wt, window_strides=(1, 1), padding="VALID",
            dimension_numbers=("NCHW", "OIHW", "NCHW"))
        return y + bb[None, :, None, None]

    def inorm(a, eps=1e-5):
        mu = jnp.mean(a, axis=(2, 3), keepdims=True)
        var = jnp.mean((a - mu) ** 2, axis=(2, 3), keepdims=True)
        return (a - mu) * jax.lax.rsqrt(var + eps)

    h = conv3x3(x, params["w1"], params["b1"], True)
    h = jnp.maximum(inorm(h), 0.0)
    h = conv3x3(h, params["mw1"], params["mb1"], False)
    h = conv3x3(h, params["w2"], params["b2"], True)
    h = inorm(h)
    h = conv3x3(h, params["mw2"], params["mb2"], False)
    return h + x   # (N,C,1,1) broadcasts against (N,C,H,W), like PyTorch


if __name__ == "__main__":
    key = jax.random.PRNGKey(0)
    # H = W = 5 is the only spatial size the module's forward admits.
    N, C, H, W = 2, 4, 5, 5
    ks = jax.random.split(key, 9)
    x = jax.random.normal(ks[0], (N, C, H, W), jnp.float32)

    fan_in = C * 3 * 3
    bound = float(1.0 / np.sqrt(fan_in))
    params = {
        # nn.Conv2d params (deterministic, PyTorch-style uniform init)
        "w1": jax.random.uniform(ks[1], (C, C, 3, 3), jnp.float32, -bound, bound),
        "b1": jax.random.uniform(ks[2], (C,), jnp.float32, -bound, bound),
        "w2": jax.random.uniform(ks[3], (C, C, 3, 3), jnp.float32, -bound, bound),
        "b2": jax.random.uniform(ks[4], (C,), jnp.float32, -bound, bound),
        # MyConv2D initializes its weight and bias to zeros (module __init__)
        "mw1": jnp.zeros((C, C, 3, 3), jnp.float32),
        "mb1": jnp.zeros((C,), jnp.float32),
        "mw2": jnp.zeros((C, C, 3, 3), jnp.float32),
        "mb2": jnp.zeros((C,), jnp.float32),
    }

    out = jax.block_until_ready(residual_block(x, params))
    assert out.shape == (N, C, H, W)
    # With zero-initialized MyConv2D layers the conv path is exactly zero, so
    # the block reduces to the identity — same as the PyTorch module.
    np.testing.assert_allclose(np.asarray(out), np.asarray(x), atol=1e-5)

    # Extra check of the full conv path against a pure-JAX reference, with
    # nonzero stand-in MyConv2D weights (same forward math, different init).
    chk = dict(params)
    chk["mw1"] = jax.random.uniform(ks[5], (C, C, 3, 3), jnp.float32, -0.1, 0.1)
    chk["mb1"] = jax.random.uniform(ks[6], (C,), jnp.float32, -0.1, 0.1)
    chk["mw2"] = jax.random.uniform(ks[7], (C, C, 3, 3), jnp.float32, -0.1, 0.1)
    chk["mb2"] = jax.random.uniform(ks[8], (C,), jnp.float32, -0.1, 0.1)
    got = jax.block_until_ready(residual_block(x, chk))
    want = jax.block_until_ready(_reference_forward(x, chk))
    # Loose tolerance so the check is robust to the MXU's f32 pass configuration.
    np.testing.assert_allclose(np.asarray(got), np.asarray(want), rtol=1e-2, atol=1e-2)

    print("KERNEL_OK")
</pallas_src>

<mosaic_0001>
module attributes {stable_mosaic.version = 11 : i64} {
  func.func @_residual_block_kernel(%arg0: memref<2x128xf32, #tpu.memory_space<vmem>>, %arg1: memref<776x128xf32, #tpu.memory_space<vmem>>, %arg2: memref<2x128xf32, #tpu.memory_space<vmem>>) attributes {dimension_semantics = [], scalar_prefetch = 0 : i64, scratch_operands = 0 : i64, tpu.core_type = #tpu.core_type<tc>} {
    %c0 = arith.constant 0 : index
    %c0_0 = arith.constant 0 : index
    %0 = vector.load %arg0[%c0, %c0_0] : memref<2x128xf32, #tpu.memory_space<vmem>>, vector<2x128xf32>
    %c0_1 = arith.constant 0 : index
    %c0_2 = arith.constant 0 : index
    %1 = vector.load %arg1[%c0_1, %c0_2] : memref<776x128xf32, #tpu.memory_space<vmem>>, vector<128x128xf32>
    %c128 = arith.constant 128 : index
    %c0_3 = arith.constant 0 : index
    %2 = vector.load %arg1[%c128, %c0_3] : memref<776x128xf32, #tpu.memory_space<vmem>>, vector<128x128xf32>
    %c256 = arith.constant 256 : index
    %c0_4 = arith.constant 0 : index
    %3 = vector.load %arg1[%c256, %c0_4] : memref<776x128xf32, #tpu.memory_space<vmem>>, vector<128x128xf32>
    %c384 = arith.constant 384 : index
    %c0_5 = arith.constant 0 : index
    %4 = vector.load %arg1[%c384, %c0_5] : memref<776x128xf32, #tpu.memory_space<vmem>>, vector<128x128xf32>
    %c512 = arith.constant 512 : index
    %c0_6 = arith.constant 0 : index
    %5 = vector.load %arg1[%c512, %c0_6] : memref<776x128xf32, #tpu.memory_space<vmem>>, vector<128x128xf32>
    %c640 = arith.constant 640 : index
    %c0_7 = arith.constant 0 : index
    %6 = vector.load %arg1[%c640, %c0_7] : memref<776x128xf32, #tpu.memory_space<vmem>>, vector<128x128xf32>
    %c768 = arith.constant 768 : index
    %c0_8 = arith.constant 0 : index
    %7 = vector.load %arg1[%c768, %c0_8] : memref<776x128xf32, #tpu.memory_space<vmem>>, vector<1x128xf32>
    %c769 = arith.constant 769 : index
    %c0_9 = arith.constant 0 : index
    %8 = vector.load %arg1[%c769, %c0_9] : memref<776x128xf32, #tpu.memory_space<vmem>>, vector<1x128xf32>
    %c770 = arith.constant 770 : index
    %c0_10 = arith.constant 0 : index
    %9 = vector.load %arg1[%c770, %c0_10] : memref<776x128xf32, #tpu.memory_space<vmem>>, vector<1x128xf32>
    %c771 = arith.constant 771 : index
    %c0_11 = arith.constant 0 : index
    %10 = vector.load %arg1[%c771, %c0_11] : memref<776x128xf32, #tpu.memory_space<vmem>>, vector<1x128xf32>
    %cst = arith.constant dense<0.000000e+00> : vector<2x128xf32>
    %11 = tpu.matmul %0, %1, %cst {dimension_numbers = #tpu.dot_dimension_numbers<[1], [0], [0], [1], [0, 0, 1, 1], [], []>} : vector<2x128xf32>, vector<128x128xf32>, vector<2x128xf32> -> vector<2x128xf32>
    %12 = vector.broadcast %7 : vector<1x128xf32> to vector<2x128xf32>
    %13 = arith.addf %11, %12 : vector<2x128xf32>
    %cst_12 = arith.constant dense<0.000000e+00> : vector<2x128xf32>
    %14 = tpu.matmul %13, %2, %cst_12 {dimension_numbers = #tpu.dot_dimension_numbers<[1], [0], [0], [1], [0, 0, 1, 1], [], []>} : vector<2x128xf32>, vector<128x128xf32>, vector<2x128xf32> -> vector<2x128xf32>
    %15 = arith.subf %13, %14 : vector<2x128xf32>
    %16 = arith.mulf %15, %15 : vector<2x128xf32>
    %cst_13 = arith.constant dense<0.000000e+00> : vector<2x128xf32>
    %17 = tpu.matmul %16, %2, %cst_13 {dimension_numbers = #tpu.dot_dimension_numbers<[1], [0], [0], [1], [0, 0, 1, 1], [], []>} : vector<2x128xf32>, vector<128x128xf32>, vector<2x128xf32> -> vector<2x128xf32>
    %cst_14 = arith.constant 9.99999974E-6 : f32
    %18 = vector.broadcast %cst_14 : f32 to vector<2x128xf32>
    %19 = arith.addf %17, %18 : vector<2x128xf32>
    %20 = math.rsqrt %19 : vector<2x128xf32>
    %21 = arith.mulf %15, %20 : vector<2x128xf32>
    %cst_15 = arith.constant 0.000000e+00 : f32
    %22 = vector.broadcast %cst_15 : f32 to vector<2x128xf32>
    %23 = arith.maximumf %21, %22 : vector<2x128xf32>
    %cst_16 = arith.constant dense<0.000000e+00> : vector<2x128xf32>
    %24 = tpu.matmul %23, %3, %cst_16 {dimension_numbers = #tpu.dot_dimension_numbers<[1], [0], [0], [1], [0, 0, 1, 1], [], []>} : vector<2x128xf32>, vector<128x128xf32>, vector<2x128xf32> -> vector<2x128xf32>
    %25 = vector.broadcast %8 : vector<1x128xf32> to vector<2x128xf32>
    %26 = arith.addf %24, %25 : vector<2x128xf32>
    %cst_17 = arith.constant dense<0.000000e+00> : vector<2x128xf32>
    %27 = tpu.matmul %26, %4, %cst_17 {dimension_numbers = #tpu.dot_dimension_numbers<[1], [0], [0], [1], [0, 0, 1, 1], [], []>} : vector<2x128xf32>, vector<128x128xf32>, vector<2x128xf32> -> vector<2x128xf32>
    %28 = vector.broadcast %9 : vector<1x128xf32> to vector<2x128xf32>
    %29 = arith.addf %27, %28 : vector<2x128xf32>
    %cst_18 = arith.constant dense<0.000000e+00> : vector<2x128xf32>
    %30 = tpu.matmul %29, %5, %cst_18 {dimension_numbers = #tpu.dot_dimension_numbers<[1], [0], [0], [1], [0, 0, 1, 1], [], []>} : vector<2x128xf32>, vector<128x128xf32>, vector<2x128xf32> -> vector<2x128xf32>
    %31 = arith.subf %29, %30 : vector<2x128xf32>
    %32 = arith.mulf %31, %31 : vector<2x128xf32>
    %cst_19 = arith.constant dense<0.000000e+00> : vector<2x128xf32>
    %33 = tpu.matmul %32, %5, %cst_19 {dimension_numbers = #tpu.dot_dimension_numbers<[1], [0], [0], [1], [0, 0, 1, 1], [], []>} : vector<2x128xf32>, vector<128x128xf32>, vector<2x128xf32> -> vector<2x128xf32>
    %cst_20 = arith.constant 9.99999974E-6 : f32
    %34 = vector.broadcast %cst_20 : f32 to vector<2x128xf32>
    %35 = arith.addf %33, %34 : vector<2x128xf32>
    %36 = math.rsqrt %35 : vector<2x128xf32>
    %37 = arith.mulf %31, %36 : vector<2x128xf32>
    %cst_21 = arith.constant dense<0.000000e+00> : vector<2x128xf32>
    %38 = tpu.matmul %37, %6, %cst_21 {dimension_numbers = #tpu.dot_dimension_numbers<[1], [0], [0], [1], [0, 0, 1, 1], [], []>} : vector<2x128xf32>, vector<128x128xf32>, vector<2x128xf32> -> vector<2x128xf32>
    %39 = vector.broadcast %10 : vector<1x128xf32> to vector<2x128xf32>
    %40 = arith.addf %38, %39 : vector<2x128xf32>
    %41 = arith.addf %0, %40 : vector<2x128xf32>
    %c0_22 = arith.constant 0 : index
    %c0_23 = arith.constant 0 : index
    %42 = vector.load %arg2[%c0_22, %c0_23] : memref<2x128xf32, #tpu.memory_space<vmem>>, vector<2x128xf32>
    tpu.vector_store %arg2[%c0_22, %c0_23], %41 {strides = array<i32>} : memref<2x128xf32, #tpu.memory_space<vmem>>, vector<2x128xf32>,
    return
  }
}

</mosaic_0001>

<llo_original>
// kernel: tpu_custom_call.1
$region0: #{tpu_custom_call.1}
  #allocation0 [shape = 'u32[]', space=smem, size = 0x4, offset = 0x4, fixed_abs, tag = 'smem constant byte address 0x4 - core index']
  #allocation1 [shape = 'u32[72,128]{1,0:T(1,128)}', space=vmem, size = 0x9000, scoped, tag = 'internal scratch']
  %s0 = inlined_call_operand.hbm [shape: f32[2,128], index: 0, kind: input, shape index: {}]
  %s1 = inlined_call_operand.hbm [shape: f32[776,128], index: 1, kind: input, shape index: {}]
  %s2 = inlined_call_operand.hbm [shape: f32[2,128], index: 2, kind: output, shape index: {}]
  %s3 = sld [smem:[#allocation0]]
  $region26: #{tpu_custom_call.1} parent=0
    _
  %s5 = ssub.s32 1, %s3
  %s6 = scalar_select 0, %s5, %s3
  $region1: #{tpu_custom_call.1} parent=0
    #allocation2 [shape = 'u8[1024]{0}', space=vmem, size = 0x400, scoped, tag = 'input window, operand 0, single buffered']
    #allocation3 [shape = 's32[1]{0}', space=sflag, size = 0x4, scoped, tag = 'scoped memory for tpu_custom_call.1']
    #allocation4 [shape = 's32[1]{0}', space=sflag, size = 0x4, scoped, tag = 'scoped memory for tpu_custom_call.1']
    #allocation5 [shape = 'u8[397312]{0}', space=vmem, size = 0x61000, scoped, tag = 'input window, operand 1, single buffered']
    #allocation6 [shape = 's32[1]{0}', space=sflag, size = 0x4, scoped, tag = 'scoped memory for tpu_custom_call.1']
    #allocation7 [shape = 'u8[1024]{0}', space=vmem, size = 0x400, scoped, tag = 'output window, operand 0, single buffered']
    %7 = vsyncpa [#allocation3], 0
    %8 = vsyncpa [#allocation6], 0
    %9 = vsyncpa [#allocation4], 0
    // Predicated region
    $region2: #{tpu_custom_call.1} parent=1 // pred_check
      _
    $region3: #{tpu_custom_call.1} parent=1 // pred_check_branch
      %11 = sbr.rel (0) target = $region5
    $region4: #{tpu_custom_call.1} parent=1 // pred_region
      %13 = vsyncadd [#allocation3], 0
      %s15 = sshll.u32 %s0, 4
      %s16 = int_to_ptr.hbm [resolvable:$true] %s15
      %s17 = sshll.u32 [#allocation2], 4
      %s18 = int_to_ptr.vmem [resolvable:$true] %s17
      %20 = dma.hbm_to_vmem [thread:$0]  %s16, 32, %s18, [#allocation3]
    $region5: #{tpu_custom_call.1} parent=1 // pred_fallthru
      _
    // Predicated region
    $region6: #{tpu_custom_call.1} parent=1 // pred_check
      _
    $region7: #{tpu_custom_call.1} parent=1 // pred_check_branch
      %22 = sbr.rel (0) target = $region9
    $region8: #{tpu_custom_call.1} parent=1 // pred_region
      %24 = vsyncadd [#allocation6], 0
      %s25 = sshll.u32 %s1, 4
      %s26 = int_to_ptr.hbm [resolvable:$true] %s25
      %s27 = sshll.u32 [#allocation5], 4
      %s28 = int_to_ptr.vmem [resolvable:$true] %s27
      %33 = dma.hbm_to_vmem [thread:$0]  %s26, 12416, %s28, [#allocation6], 128, 128, 8
    $region9: #{tpu_custom_call.1} parent=1 // pred_fallthru
      _
    // Predicated region
    $region10: #{tpu_custom_call.1} parent=1 // pred_check
      _
    $region11: #{tpu_custom_call.1} parent=1 // pred_check_branch
      %35 = sbr.rel (0) target = $region13
    $region12: #{tpu_custom_call.1} parent=1 // pred_region
      %37 = dma.done [#allocation3], 32
    $region13: #{tpu_custom_call.1} parent=1 // pred_fallthru
      _
    // Predicated region
    $region14: #{tpu_custom_call.1} parent=1 // pred_check
      _
    $region15: #{tpu_custom_call.1} parent=1 // pred_check_branch
      %39 = sbr.rel (0) target = $region17
    $region16: #{tpu_custom_call.1} parent=1 // pred_region
      %41 = dma.done [#allocation6], 12416
    $region17: #{tpu_custom_call.1} parent=1 // pred_fallthru
      _
    %v42 = vld [vmem:[#allocation2] sm:$0x3]
    %v43 = vld [vmem:[#allocation5] sm:$0xff]
    %v44 = vld [vmem:[#allocation5 + $0x8] sm:$0xff]
    %v45 = vld [vmem:[#allocation5 + $0x10] sm:$0xff]
    %v46 = vld [vmem:[#allocation5 + $0x18] sm:$0xff]
    %v47 = vld [vmem:[#allocation5 + $0x20] sm:$0xff]
    %v48 = vld [vmem:[#allocation5 + $0x28] sm:$0xff]
    %v49 = vld [vmem:[#allocation5 + $0x30] sm:$0xff]
    %v50 = vld [vmem:[#allocation5 + $0x38] sm:$0xff]
    %v51 = vld [vmem:[#allocation5 + $0x40] sm:$0xff]
    %v52 = vld [vmem:[#allocation5 + $0x48] sm:$0xff]
    %v53 = vld [vmem:[#allocation5 + $0x50] sm:$0xff]
    %v54 = vld [vmem:[#allocation5 + $0x58] sm:$0xff]
    %v55 = vld [vmem:[#allocation5 + $0x60] sm:$0xff]
    %v56 = vld [vmem:[#allocation5 + $0x68] sm:$0xff]
    %v57 = vld [vmem:[#allocation5 + $0x70] sm:$0xff]
    %v58 = vld [vmem:[#allocation5 + $0x78] sm:$0xff]
    %v59 = vld [vmem:[#allocation5 + $0x80] sm:$0xff]
    %v60 = vld [vmem:[#allocation5 + $0x88] sm:$0xff]
    %v61 = vld [vmem:[#allocation5 + $0x90] sm:$0xff]
    %v62 = vld [vmem:[#allocation5 + $0x98] sm:$0xff]
    %v63 = vld [vmem:[#allocation5 + $0xa0] sm:$0xff]
    %v64 = vld [vmem:[#allocation5 + $0xa8] sm:$0xff]
    %v65 = vld [vmem:[#allocation5 + $0xb0] sm:$0xff]
    %v66 = vld [vmem:[#allocation5 + $0xb8] sm:$0xff]
    %v67 = vld [vmem:[#allocation5 + $0xc0] sm:$0xff]
    %v68 = vld [vmem:[#allocation5 + $0xc8] sm:$0xff]
    %v69 = vld [vmem:[#allocation5 + $0xd0] sm:$0xff]
    %v70 = vld [vmem:[#allocation5 + $0xd8] sm:$0xff]
    %v71 = vld [vmem:[#allocation5 + $0xe0] sm:$0xff]
    %v72 = vld [vmem:[#allocation5 + $0xe8] sm:$0xff]
    %v73 = vld [vmem:[#allocation5 + $0xf0] sm:$0xff]
    %v74 = vld [vmem:[#allocation5 + $0xf8] sm:$0xff]
    %v75 = vld [vmem:[#allocation5 + $0x100] sm:$0xff]
    %v76 = vld [vmem:[#allocation5 + $0x108] sm:$0xff]
    %v77 = vld [vmem:[#allocation5 + $0x110] sm:$0xff]
    %v78 = vld [vmem:[#allocation5 + $0x118] sm:$0xff]
    %v79 = vld [vmem:[#allocation5 + $0x120] sm:$0xff]
    %v80 = vld [vmem:[#allocation5 + $0x128] sm:$0xff]
    %v81 = vld [vmem:[#allocation5 + $0x130] sm:$0xff]
    %v82 = vld [vmem:[#allocation5 + $0x138] sm:$0xff]
    %v83 = vld [vmem:[#allocation5 + $0x140] sm:$0xff]
    %v84 = vld [vmem:[#allocation5 + $0x148] sm:$0xff]
    %v85 = vld [vmem:[#allocation5 + $0x150] sm:$0xff]
    %v86 = vld [vmem:[#allocation5 + $0x158] sm:$0xff]
    %v87 = vld [vmem:[#allocation5 + $0x160] sm:$0xff]
    %v88 = vld [vmem:[#allocation5 + $0x168] sm:$0xff]
    %v89 = vld [vmem:[#allocation5 + $0x170] sm:$0xff]
    %v90 = vld [vmem:[#allocation5 + $0x178] sm:$0xff]
    %v91 = vld [vmem:[#allocation5 + $0x180] sm:$0xff]
    %v92 = vld [vmem:[#allocation5 + $0x188] sm:$0xff]
    %v93 = vld [vmem:[#allocation5 + $0x190] sm:$0xff]
    %v94 = vld [vmem:[#allocation5 + $0x198] sm:$0xff]
    %v95 = vld [vmem:[#allocation5 + $0x1a0] sm:$0xff]
    %v96 = vld [vmem:[#allocation5 + $0x1a8] sm:$0xff]
    %v97 = vld [vmem:[#allocation5 + $0x1b0] sm:$0xff]
    %v98 = vld [vmem:[#allocation5 + $0x1b8] sm:$0xff]
    %v99 = vld [vmem:[#allocation5 + $0x1c0] sm:$0xff]
    %v100 = vld [vmem:[#allocation5 + $0x1c8] sm:$0xff]
    %v101 = vld [vmem:[#allocation5 + $0x1d0] sm:$0xff]
    %v102 = vld [vmem:[#allocation5 + $0x1d8] sm:$0xff]
    %v103 = vld [vmem:[#allocation5 + $0x1e0] sm:$0xff]
    %v104 = vld [vmem:[#allocation5 + $0x1e8] sm:$0xff]
    %v105 = vld [vmem:[#allocation5 + $0x1f0] sm:$0xff]
    %v106 = vld [vmem:[#allocation5 + $0x1f8] sm:$0xff]
    %v107 = vld [vmem:[#allocation5 + $0x200] sm:$0xff]
    %v108 = vld [vmem:[#allocation5 + $0x208] sm:$0xff]
    %v109 = vld [vmem:[#allocation5 + $0x210] sm:$0xff]
    %v110 = vld [vmem:[#allocation5 + $0x218] sm:$0xff]
    %v111 = vld [vmem:[#allocation5 + $0x220] sm:$0xff]
    %v112 = vld [vmem:[#allocation5 + $0x228] sm:$0xff]
    %v113 = vld [vmem:[#allocation5 + $0x230] sm:$0xff]
    %v114 = vld [vmem:[#allocation5 + $0x238] sm:$0xff]
    %v115 = vld [vmem:[#allocation5 + $0x240] sm:$0xff]
    %v116 = vld [vmem:[#allocation5 + $0x248] sm:$0xff]
    %v117 = vld [vmem:[#allocation5 + $0x250] sm:$0xff]
    %v118 = vld [vmem:[#allocation5 + $0x258] sm:$0xff]
    %v119 = vld [vmem:[#allocation5 + $0x260] sm:$0xff]
    %v120 = vld [vmem:[#allocation5 + $0x268] sm:$0xff]
    %v121 = vld [vmem:[#allocation5 + $0x270] sm:$0xff]
    %v122 = vld [vmem:[#allocation5 + $0x278] sm:$0xff]
    %v123 = vld [vmem:[#allocation5 + $0x280] sm:$0xff]
    %v124 = vld [vmem:[#allocation5 + $0x288] sm:$0xff]
    %v125 = vld [vmem:[#allocation5 + $0x290] sm:$0xff]
    %v126 = vld [vmem:[#allocation5 + $0x298] sm:$0xff]
    %v127 = vld [vmem:[#allocation5 + $0x2a0] sm:$0xff]
    %v128 = vld [vmem:[#allocation5 + $0x2a8] sm:$0xff]
    %v129 = vld [vmem:[#allocation5 + $0x2b0] sm:$0xff]
    %v130 = vld [vmem:[#allocation5 + $0x2b8] sm:$0xff]
    %v131 = vld [vmem:[#allocation5 + $0x2c0] sm:$0xff]
    %v132 = vld [vmem:[#allocation5 + $0x2c8] sm:$0xff]
    %v133 = vld [vmem:[#allocation5 + $0x2d0] sm:$0xff]
    %v134 = vld [vmem:[#allocation5 + $0x2d8] sm:$0xff]
    %v135 = vld [vmem:[#allocation5 + $0x2e0] sm:$0xff]
    %v136 = vld [vmem:[#allocation5 + $0x2e8] sm:$0xff]
    %v137 = vld [vmem:[#allocation5 + $0x2f0] sm:$0xff]
    %v138 = vld [vmem:[#allocation5 + $0x2f8] sm:$0xff]
    %v139 = vld [vmem:[#allocation5 + $0x300] sm:$0x1]
    %v140 = vld [vmem:[#allocation5 + $0x301] sm:$0x1]
    %v141 = vld [vmem:[#allocation5 + $0x302] sm:$0x1]
    %v142 = vld [vmem:[#allocation5 + $0x303] sm:$0x1]
    %v143 = vperm.slane %v139, 0
    %144 = vmatpush.msra.mxu0 %v58
    %145 = vmatpush.msra.mxu0 %v57
    %146 = vmatpush.msra.mxu0 %v56
    %147 = vmatpush.msra.mxu0 %v55
    %148 = vmatpush.msra.mxu0 %v54
    %149 = vmatpush.msra.mxu0 %v53
    %150 = vmatpush.msra.mxu0 %v52
    %151 = vmatpush.msra.mxu0 %v51
    %152 = vmatpush.msra.mxu0 %v50
    %153 = vmatpush.msra.mxu0 %v49
    %154 = vmatpush.msra.mxu0 %v48
    %155 = vmatpush.msra.mxu0 %v47
    %156 = vmatpush.msra.mxu0 %v46
    %157 = vmatpush.msra.mxu0 %v45
    %158 = vmatpush.msra.mxu0 %v44
    %159 = vmatpush.msra.mxu0 %v43
    %160 = vmatmul.f32.gmra.mxu0 %v42
    %v161 = vpop.f32.mrf.mxu0
    %v162 = vadd.f32 %v143, %v161
    %163 = vdwg.mxu0
    %164 = vmatpush.msra.mxu0 %v74
    %165 = vmatpush.msra.mxu0 %v73
    %166 = vmatpush.msra.mxu0 %v72
    %167 = vmatpush.msra.mxu0 %v71
    %168 = vmatpush.msra.mxu0 %v70
    %169 = vmatpush.msra.mxu0 %v69
    %170 = vmatpush.msra.mxu0 %v68
    %171 = vmatpush.msra.mxu0 %v67
    %172 = vmatpush.msra.mxu0 %v66
    %173 = vmatpush.msra.mxu0 %v65
    %174 = vmatpush.msra.mxu0 %v64
    %175 = vmatpush.msra.mxu0 %v63
    %176 = vmatpush.msra.mxu0 %v62
    %177 = vmatpush.msra.mxu0 %v61
    %178 = vmatpush.msra.mxu0 %v60
    %179 = vmatpush.msra.mxu0 %v59
    %180 = vmatmul.f32.gmra.mxu0 %v162
    %v181 = vpop.f32.mrf.mxu0
    %v182 = vadd.f32 0.0, %v181
    %183 = vdwg.mxu0
    %v184 = vsub.f32 %v162, %v182
    %v185 = vmul.f32 %v184, %v184
    %186 = vmatpush.msra.mxu0 %v74
    %187 = vmatpush.msra.mxu0 %v73
    %188 = vmatpush.msra.mxu0 %v72
    %189 = vmatpush.msra.mxu0 %v71
    %190 = vmatpush.msra.mxu0 %v70
    %191 = vmatpush.msra.mxu0 %v69
    %192 = vmatpush.msra.mxu0 %v68
    %193 = vmatpush.msra.mxu0 %v67
    %194 = vmatpush.msra.mxu0 %v66
    %195 = vmatpush.msra.mxu0 %v65
    %196 = vmatpush.msra.mxu0 %v64
    %197 = vmatpush.msra.mxu0 %v63
    %198 = vmatpush.msra.mxu0 %v62
    %199 = vmatpush.msra.mxu0 %v61
    %200 = vmatpush.msra.mxu0 %v60
    %201 = vmatpush.msra.mxu0 %v59
    %202 = vmatmul.f32.gmra.mxu0 %v185
    %v203 = vpop.f32.mrf.mxu0
    %v204 = vadd.f32 1e-05, %v203
    %205 = vdwg.mxu0
    %v206 = vrsqrt.pop %v204
    %v207 = vmul.f32 %v206, %v204
    %v208 = vmul.f32 %v207, %v206
    %v209 = vmul.f32 0.5, %v208
    %v210 = vsub.f32 1.5, %v209
    %v211 = vmul.f32 %v206, %v210
    %vm212 = vweird.f32 %v204
    %vm213 = vweird.f32 %v206
    %vm214 = vmor %vm212, %vm213
    %v215 = vsel %vm214, %v206, %v211
    %v216 = vmul.f32 %v184, %v215
    %v217 = vmax.f32 %v216, 0.0
    %v218 = vperm.slane %v140, 0
    %219 = vmatpush.msra.mxu0 %v90
    %220 = vmatpush.msra.mxu0 %v89
    %221 = vmatpush.msra.mxu0 %v88
    %222 = vmatpush.msra.mxu0 %v87
    %223 = vmatpush.msra.mxu0 %v86
    %224 = vmatpush.msra.mxu0 %v85
    %225 = vmatpush.msra.mxu0 %v84
    %226 = vmatpush.msra.mxu0 %v83
    %227 = vmatpush.msra.mxu0 %v82
    %228 = vmatpush.msra.mxu0 %v81
    %229 = vmatpush.msra.mxu0 %v80
    %230 = vmatpush.msra.mxu0 %v79
    %231 = vmatpush.msra.mxu0 %v78
    %232 = vmatpush.msra.mxu0 %v77
    %233 = vmatpush.msra.mxu0 %v76
    %234 = vmatpush.msra.mxu0 %v75
    %235 = vmatmul.f32.gmra.mxu0 %v217
    %v236 = vpop.f32.mrf.mxu0
    %v237 = vadd.f32 %v218, %v236
    %238 = vdwg.mxu0
    %v239 = vperm.slane %v141, 0
    %240 = vmatpush.msra.mxu0 %v106
    %241 = vmatpush.msra.mxu0 %v105
    %242 = vmatpush.msra.mxu0 %v104
    %243 = vmatpush.msra.mxu0 %v103
    %244 = vmatpush.msra.mxu0 %v102
    %245 = vmatpush.msra.mxu0 %v101
    %246 = vmatpush.msra.mxu0 %v100
    %247 = vmatpush.msra.mxu0 %v99
    %248 = vmatpush.msra.mxu0 %v98
    %249 = vmatpush.msra.mxu0 %v97
    %250 = vmatpush.msra.mxu0 %v96
    %251 = vmatpush.msra.mxu0 %v95
    %252 = vmatpush.msra.mxu0 %v94
    %253 = vmatpush.msra.mxu0 %v93
    %254 = vmatpush.msra.mxu0 %v92
    %255 = vmatpush.msra.mxu0 %v91
    %256 = vmatmul.f32.gmra.mxu0 %v237
    %v257 = vpop.f32.mrf.mxu0
    %v258 = vadd.f32 %v239, %v257
    %259 = vdwg.mxu0
    %260 = vmatpush.msra.mxu0 %v122
    %261 = vmatpush.msra.mxu0 %v121
    %262 = vmatpush.msra.mxu0 %v120
    %263 = vmatpush.msra.mxu0 %v119
    %264 = vmatpush.msra.mxu0 %v118
    %265 = vmatpush.msra.mxu0 %v117
    %266 = vmatpush.msra.mxu0 %v116
    %267 = vmatpush.msra.mxu0 %v115
    %268 = vmatpush.msra.mxu0 %v114
    %269 = vmatpush.msra.mxu0 %v113
    %270 = vmatpush.msra.mxu0 %v112
    %271 = vmatpush.msra.mxu0 %v111
    %272 = vmatpush.msra.mxu0 %v110
    %273 = vmatpush.msra.mxu0 %v109
    %274 = vmatpush.msra.mxu0 %v108
    %275 = vmatpush.msra.mxu0 %v107
    %276 = vmatmul.f32.gmra.mxu0 %v258
    %v277 = vpop.f32.mrf.mxu0
    %v278 = vadd.f32 0.0, %v277
    %279 = vdwg.mxu0
    %v280 = vsub.f32 %v258, %v278
    %v281 = vmul.f32 %v280, %v280
    %282 = vmatpush.msra.mxu0 %v122
    %283 = vmatpush.msra.mxu0 %v121
    %284 = vmatpush.msra.mxu0 %v120
    %285 = vmatpush.msra.mxu0 %v119
    %286 = vmatpush.msra.mxu0 %v118
    %287 = vmatpush.msra.mxu0 %v117
    %288 = vmatpush.msra.mxu0 %v116
    %289 = vmatpush.msra.mxu0 %v115
    %290 = vmatpush.msra.mxu0 %v114
    %291 = vmatpush.msra.mxu0 %v113
    %292 = vmatpush.msra.mxu0 %v112
    %293 = vmatpush.msra.mxu0 %v111
    %294 = vmatpush.msra.mxu0 %v110
    %295 = vmatpush.msra.mxu0 %v109
    %296 = vmatpush.msra.mxu0 %v108
    %297 = vmatpush.msra.mxu0 %v107
    %298 = vmatmul.f32.gmra.mxu0 %v281
    %v299 = vpop.f32.mrf.mxu0
    %v300 = vadd.f32 1e-05, %v299
    %301 = vdwg.mxu0
    %v302 = vrsqrt.pop %v300
    %v303 = vmul.f32 %v302, %v300
    %v304 = vmul.f32 %v303, %v302
    %v305 = vmul.f32 0.5, %v304
    %v306 = vsub.f32 1.5, %v305
    %v307 = vmul.f32 %v302, %v306
    %vm308 = vweird.f32 %v300
    %vm309 = vweird.f32 %v302
    %vm310 = vmor %vm308, %vm309
    %v311 = vsel %vm310, %v302, %v307
    %v312 = vmul.f32 %v280, %v311
    %v313 = vperm.slane %v142, 0
    %314 = vmatpush.msra.mxu0 %v138
    %315 = vmatpush.msra.mxu0 %v137
    %316 = vmatpush.msra.mxu0 %v136
    %317 = vmatpush.msra.mxu0 %v135
    %318 = vmatpush.msra.mxu0 %v134
    %319 = vmatpush.msra.mxu0 %v133
    %320 = vmatpush.msra.mxu0 %v132
    %321 = vmatpush.msra.mxu0 %v131
    %322 = vmatpush.msra.mxu0 %v130
    %323 = vmatpush.msra.mxu0 %v129
    %324 = vmatpush.msra.mxu0 %v128
    %325 = vmatpush.msra.mxu0 %v127
    %326 = vmatpush.msra.mxu0 %v126
    %327 = vmatpush.msra.mxu0 %v125
    %328 = vmatpush.msra.mxu0 %v124
    %329 = vmatpush.msra.mxu0 %v123
    %330 = vmatmul.f32.gmra.mxu0 %v312
    %v331 = vpop.f32.mrf.mxu0
    %v332 = vadd.f32 %v313, %v331
    %333 = vdwg.mxu0
    %v334 = vadd.f32 %v42, %v332
    %335 = vst [vmem:[#allocation7] sm:$0x3] %v334
    // Predicated region
    $region18: #{tpu_custom_call.1} parent=1 // pred_check
      _
    $region19: #{tpu_custom_call.1} parent=1 // pred_check_branch
      %337 = sbr.rel (0) target = $region21
    $region20: #{tpu_custom_call.1} parent=1 // pred_region
      %339 = vsyncadd [#allocation4], 0
      %s341 = sshll.u32 [#allocation7], 4
      %s342 = int_to_ptr.vmem [resolvable:$true] %s341
      %s343 = sshll.u32 %s2, 4
      %s344 = int_to_ptr.hbm [resolvable:$true] %s343
      %346 = dma.vmem_to_hbm [thread:$0]  %s342, 32, %s344, [#allocation4]
    $region21: #{tpu_custom_call.1} parent=1 // pred_fallthru
      _
    // Predicated region
    $region22: #{tpu_custom_call.1} parent=1 // pred_check
      _
    $region23: #{tpu_custom_call.1} parent=1 // pred_check_branch
      %348 = sbr.rel (0) target = $region25
    $region24: #{tpu_custom_call.1} parent=1 // pred_region
      %350 = dma.done [#allocation4], 32
    $region25: #{tpu_custom_call.1} parent=1 // pred_fallthru
      _
    %351 = vsyncpa [#allocation3], 1
    %352 = vsyncpa [#allocation6], 1
    %353 = vsyncpa [#allocation4], 1

</llo_original>
